<compile_context>
chip_gen: v7x
topology: tpu7x:2x2x1
jax: 0.10.0
libtpu: 0.0.40
codegen_flags: <defaults>
</compile_context>

<pallas_src>
import jax
import jax.numpy as jnp
from jax import lax
from jax.experimental import pallas as pl
from jax.experimental.pallas import tpu as pltpu


def _round_up(x: int, m: int) -> int:
    return (x + m - 1) // m * m


def _adv_loss_kernel(ori_ref, res_ref, w_ref, b_ref, out_ref, acc_t_ref, acc_r_ref):
    # ori_ref/res_ref: (tB, tD) native dtype    w_ref: (K, tD) or (K, D_pad) bf16
    # b_ref: (1, K) f32                         out_ref: (tB, 128) f32
    # acc_t_ref/acc_r_ref: (tB, K) f32 logits accumulators (ori / res streams)
    k = pl.program_id(1)
    tB, tD = ori_ref.shape
    K = acc_t_ref.shape[1]

    @pl.when(k == 0)
    def _init():
        acc_t_ref[...] = jnp.zeros_like(acc_t_ref)
        acc_r_ref[...] = jnp.zeros_like(acc_r_ref)

    # Current D tile of the weights: full read when W is streamed per tile (or
    # there is a single D tile), dynamic lane-slice when W is VMEM-resident.
    if w_ref.shape[1] == tD:
        w = w_ref[...]
    else:
        off = pl.multiple_of(k * tD, tD)
        w = w_ref[:, pl.ds(off, tD)]

    dn = (((1,), (1,)), ((), ()))      # contract last dims of both: x @ W^T
    acc_t_ref[...] += lax.dot_general(
        ori_ref[...].astype(jnp.bfloat16), w, dn,
        preferred_element_type=jnp.float32)
    acc_r_ref[...] += lax.dot_general(
        res_ref[...].astype(jnp.bfloat16), w, dn,
        preferred_element_type=jnp.float32)

    @pl.when(k == pl.num_programs(1) - 1)
    def _epilogue():
        bias = b_ref[...]                                      # (1, K) f32
        t = acc_t_ref[...] + bias                              # model(ori) logits
        r = acc_r_ref[...] + bias                              # model(res) logits

        # target_label = argmax(t, dim=1): first maximal index (torch semantics).
        # Note: logits come from bf16 inputs/weights with f32 accumulation, so a
        # near-tie in model(ori) can resolve differently than a pure-f32 model.
        iota_k = lax.broadcasted_iota(jnp.int32, (tB, K), 1)
        t_max = jnp.max(t, axis=-1, keepdims=True)
        label = jnp.min(jnp.where(t == t_max, iota_k, K),
                        axis=-1, keepdims=True)                # (tB, 1)

        # CrossEntropy(-r, label), per example (max-shifted logsumexp, f32).
        xneg = -r
        m = jnp.max(xneg, axis=-1, keepdims=True)
        lse = m + jnp.log(jnp.sum(jnp.exp(xneg - m), axis=-1, keepdims=True))
        picked = jnp.sum(jnp.where(iota_k == label, xneg, 0.0),
                         axis=-1, keepdims=True)
        loss = lse - picked                                    # (tB, 1)
        # Lane-dense, unmasked store: replicate across 128 lanes (writeback is
        # tiny and happens once per B tile).
        out_ref[...] = jnp.broadcast_to(loss, (tB, 128))


def adversarial_loss(ori, res, w_kd, b):
    """ori, res: [B, ...] (e.g. NCHW); w_kd: [K, D] (nn.Linear layout); b: [K] or [1, K]."""
    B = ori.shape[0]
    ori2 = ori.reshape(B, -1)
    res2 = res.reshape(B, -1)
    D = ori2.shape[1]
    K = w_kd.shape[0]

    act_bytes = jnp.dtype(ori2.dtype).itemsize

    # ---- batch tiling: a single full-dim tile for tiny B (no pad copy);
    # otherwise aim for >= 2 B tiles so v7x can shard across TensorCores. ----
    if B <= 16:
        tB = B
    else:
        tB = min(256, _round_up(-(-B // 2), 16))
    B_pad = _round_up(B, tB)

    # ---- reduction (D) tiling: as large as the VMEM budget allows (fewer grid
    # steps / accumulator RMW passes); prefer a 128-multiple divisor of the
    # 128-aligned D so no extra full pad copy of the activations is needed. ----
    D128 = _round_up(D, 128)
    act_budget = 16 * 1024 * 1024             # 2 streams x 2 buffers (+ streamed W)
    tD_cap = act_budget // (4 * tB * act_bytes + 4 * K)
    tD_cap = max(512, min(8192, (tD_cap // 128) * 128))
    if D128 <= tD_cap:
        tD = D128
    else:
        units = D128 // 128
        best = 1
        for q in range(1, tD_cap // 128 + 1):
            if units % q == 0:
                best = q
        tD = best * 128 if best * 128 >= 1024 else tD_cap
    D_pad = _round_up(D128, tD)

    # W / bias are tiny: cast/pad them in the wrapper.  Activations stream in
    # their native dtype and are only padded when alignment truly requires it.
    w_f = w_kd.astype(jnp.bfloat16)
    b_f = jnp.asarray(b, jnp.float32).reshape(1, K)
    if D_pad != D:
        ori2 = jnp.pad(ori2, ((0, 0), (0, D_pad - D)))
        res2 = jnp.pad(res2, ((0, 0), (0, D_pad - D)))
        w_f = jnp.pad(w_f, ((0, 0), (0, D_pad - D)))
    if B_pad != B:
        ori2 = jnp.pad(ori2, ((0, B_pad - B), (0, 0)))
        res2 = jnp.pad(res2, ((0, B_pad - B), (0, 0)))

    grid = (B_pad // tB, D_pad // tD)

    # Keep the whole (small-K) weight matrix VMEM-resident when it fits,
    # removing its per-step re-fetch; otherwise stream (K, tD) tiles.
    if K * D_pad * 2 <= 4 * 1024 * 1024:
        w_spec = pl.BlockSpec((K, D_pad), lambda i, k: (0, 0))
    else:
        w_spec = pl.BlockSpec((K, tD), lambda i, k: (0, k))

    # Shard B tiles across TensorCores (v7x megacore) when there is more than
    # one B tile; otherwise plain parallel/arbitrary.
    if B_pad // tB >= 2:
        dim_sem = (pltpu.CORE_PARALLEL, pltpu.ARBITRARY)
    else:
        dim_sem = (pltpu.PARALLEL, pltpu.ARBITRARY)

    per_example = pl.pallas_call(
        _adv_loss_kernel,
        out_shape=jax.ShapeDtypeStruct((B_pad, 128), jnp.float32),
        grid_spec=pltpu.PrefetchScalarGridSpec(
            num_scalar_prefetch=0,
            grid=grid,
            in_specs=[
                pl.BlockSpec((tB, tD), lambda i, k: (i, k)),   # ori tile
                pl.BlockSpec((tB, tD), lambda i, k: (i, k)),   # res tile
                w_spec,                                        # W (resident or tiled)
                pl.BlockSpec((1, K), lambda i, k: (0, 0)),     # bias
            ],
            out_specs=pl.BlockSpec((tB, 128), lambda i, k: (i, 0)),
            scratch_shapes=[
                pltpu.VMEM((tB, K), jnp.float32),   # logits(ori) accumulator
                pltpu.VMEM((tB, K), jnp.float32),   # logits(res) accumulator
            ],
        ),
        compiler_params=pltpu.CompilerParams(
            dimension_semantics=dim_sem,
            vmem_limit_bytes=32 * 1024 * 1024,
        ),
    )(ori2, res2, w_f, b_f)

    # Finish the mean over the real (unpadded) batch in the wrapper.
    return jnp.mean(per_example[:B, 0])


def _reference(ori, res, w_kd, b):
    """Pure-JAX f32 reference mirroring the PyTorch forward."""
    B = ori.shape[0]
    of = ori.reshape(B, -1).astype(jnp.float32)
    rf = res.reshape(B, -1).astype(jnp.float32)
    wf = w_kd.astype(jnp.float32)
    bf = jnp.asarray(b, jnp.float32).reshape(1, -1)
    t = of @ wf.T + bf
    r = rf @ wf.T + bf
    y = jnp.argmax(t, axis=1)
    x = -r
    lse = jax.scipy.special.logsumexp(x, axis=-1)
    picked = jnp.take_along_axis(x, y[:, None], axis=-1)[:, 0]
    return jnp.mean(lse - picked)


if __name__ == "__main__":
    key = jax.random.PRNGKey(0)
    k1, k2, k3, k4 = jax.random.split(key, 4)

    B, C, H, W = 2, 4, 16, 16
    D = C * H * W
    K = 10  # number of classes

    # bf16 end-to-end activations / weights (kernel streams native dtype).
    ori = jax.random.normal(k1, (B, C, H, W), dtype=jnp.float32).astype(jnp.bfloat16)
    res = (ori.astype(jnp.float32)
           + 0.1 * jax.random.normal(k2, (B, C, H, W), dtype=jnp.float32)
           ).astype(jnp.bfloat16)

    # deterministic frozen "model": linear classifier, W in [K, D] layout.
    w = (0.02 * jax.random.normal(k3, (K, D), dtype=jnp.float32)).astype(jnp.bfloat16)
    b = 0.01 * jax.random.normal(k4, (1, K), dtype=jnp.float32)

    loss = adversarial_loss(ori, res, w, b)
    jax.block_until_ready(loss)

    ref = _reference(ori, res, w, b)
    assert jnp.allclose(loss, ref, atol=1e-3, rtol=1e-3), (loss, ref)

    print("KERNEL_OK")
</pallas_src>

<mosaic_0001>
module attributes {stable_mosaic.version = 11 : i64} {
  func.func @_adv_loss_kernel(%arg0: i32, %arg1: i32, %arg2: memref<2x1024xbf16, #tpu.memory_space<vmem>>, %arg3: memref<2x1024xbf16, #tpu.memory_space<vmem>>, %arg4: memref<10x1024xbf16, #tpu.memory_space<vmem>>, %arg5: memref<1x10xf32, #tpu.memory_space<vmem>>, %arg6: memref<2x128xf32, #tpu.memory_space<vmem>>, %arg7: memref<2x10xf32, #tpu.memory_space<vmem>>, %arg8: memref<2x10xf32, #tpu.memory_space<vmem>>) attributes {dimension_semantics = [#tpu.dimension_semantics<parallel>, #tpu.dimension_semantics<arbitrary>], iteration_bounds = array<i64: 1, 1>, scalar_prefetch = 0 : i64, scratch_operands = 2 : i64, tpu.core_type = #tpu.core_type<tc>, window_params = [{transform_indices = @transform_0, window_bounds = array<i64: 2, 1024>}, {transform_indices = @transform_1, window_bounds = array<i64: 2, 1024>}, {pipeline_mode = #tpu.pipeline_mode<synchronous>, transform_indices = @transform_2, window_bounds = array<i64: 10, 1024>}, {pipeline_mode = #tpu.pipeline_mode<synchronous>, transform_indices = @transform_3, window_bounds = array<i64: 1, 10>}, {transform_indices = @transform_4, window_bounds = array<i64: 2, 128>}]} {
    %c0_i32 = arith.constant 0 : i32
    %0 = arith.cmpi eq, %arg1, %c0_i32 : i32
    %1 = arith.extui %0 : i1 to i32
    %c0_i32_0 = arith.constant 0 : i32
    %2 = arith.cmpi ne, %1, %c0_i32_0 : i32
    scf.if %2 {
      %cst_17 = arith.constant 0.000000e+00 : f32
      %17 = vector.broadcast %cst_17 : f32 to vector<2x10xf32>
      %c0_18 = arith.constant 0 : index
      %c0_19 = arith.constant 0 : index
      %18 = vector.load %arg7[%c0_18, %c0_19] : memref<2x10xf32, #tpu.memory_space<vmem>>, vector<2x10xf32>
      tpu.vector_store %arg7[%c0_18, %c0_19], %17 {strides = array<i32>} : memref<2x10xf32, #tpu.memory_space<vmem>>, vector<2x10xf32>,
      %cst_20 = arith.constant 0.000000e+00 : f32
      %19 = vector.broadcast %cst_20 : f32 to vector<2x10xf32>
      %c0_21 = arith.constant 0 : index
      %c0_22 = arith.constant 0 : index
      %20 = vector.load %arg8[%c0_21, %c0_22] : memref<2x10xf32, #tpu.memory_space<vmem>>, vector<2x10xf32>
      tpu.vector_store %arg8[%c0_21, %c0_22], %19 {strides = array<i32>} : memref<2x10xf32, #tpu.memory_space<vmem>>, vector<2x10xf32>,
    } else {
    }
    %c0 = arith.constant 0 : index
    %c0_1 = arith.constant 0 : index
    %3 = vector.load %arg4[%c0, %c0_1] : memref<10x1024xbf16, #tpu.memory_space<vmem>>, vector<10x1024xbf16>
    %c0_2 = arith.constant 0 : index
    %c0_3 = arith.constant 0 : index
    %4 = vector.load %arg7[%c0_2, %c0_3] : memref<2x10xf32, #tpu.memory_space<vmem>>, vector<2x10xf32>
    %c0_4 = arith.constant 0 : index
    %c0_5 = arith.constant 0 : index
    %5 = vector.load %arg2[%c0_4, %c0_5] : memref<2x1024xbf16, #tpu.memory_space<vmem>>, vector<2x1024xbf16>
    %cst = arith.constant dense<0.000000e+00> : vector<2x10xf32>
    %6 = tpu.matmul %5, %3, %cst {dimension_numbers = #tpu.dot_dimension_numbers<[1], [1], [0], [0], [0, 0, 1, 0], [], []>} : vector<2x1024xbf16>, vector<10x1024xbf16>, vector<2x10xf32> -> vector<2x10xf32>
    %7 = arith.addf %4, %6 : vector<2x10xf32>
    %c0_6 = arith.constant 0 : index
    %c0_7 = arith.constant 0 : index
    %8 = vector.load %arg7[%c0_6, %c0_7] : memref<2x10xf32, #tpu.memory_space<vmem>>, vector<2x10xf32>
    tpu.vector_store %arg7[%c0_6, %c0_7], %7 {strides = array<i32>} : memref<2x10xf32, #tpu.memory_space<vmem>>, vector<2x10xf32>,
    %c0_8 = arith.constant 0 : index
    %c0_9 = arith.constant 0 : index
    %9 = vector.load %arg8[%c0_8, %c0_9] : memref<2x10xf32, #tpu.memory_space<vmem>>, vector<2x10xf32>
    %c0_10 = arith.constant 0 : index
    %c0_11 = arith.constant 0 : index
    %10 = vector.load %arg3[%c0_10, %c0_11] : memref<2x1024xbf16, #tpu.memory_space<vmem>>, vector<2x1024xbf16>
    %cst_12 = arith.constant dense<0.000000e+00> : vector<2x10xf32>
    %11 = tpu.matmul %10, %3, %cst_12 {dimension_numbers = #tpu.dot_dimension_numbers<[1], [1], [0], [0], [0, 0, 1, 0], [], []>} : vector<2x1024xbf16>, vector<10x1024xbf16>, vector<2x10xf32> -> vector<2x10xf32>
    %12 = arith.addf %9, %11 : vector<2x10xf32>
    %c0_13 = arith.constant 0 : index
    %c0_14 = arith.constant 0 : index
    %13 = vector.load %arg8[%c0_13, %c0_14] : memref<2x10xf32, #tpu.memory_space<vmem>>, vector<2x10xf32>
    tpu.vector_store %arg8[%c0_13, %c0_14], %12 {strides = array<i32>} : memref<2x10xf32, #tpu.memory_space<vmem>>, vector<2x10xf32>,
    %c0_i32_15 = arith.constant 0 : i32
    %14 = arith.cmpi eq, %arg1, %c0_i32_15 : i32
    %15 = arith.extui %14 : i1 to i32
    %c0_i32_16 = arith.constant 0 : i32
    %16 = arith.cmpi ne, %15, %c0_i32_16 : i32
    scf.if %16 {
      %c0_17 = arith.constant 0 : index
      %c0_18 = arith.constant 0 : index
      %17 = vector.load %arg5[%c0_17, %c0_18] : memref<1x10xf32, #tpu.memory_space<vmem>>, vector<1x10xf32>
      %c0_19 = arith.constant 0 : index
      %c0_20 = arith.constant 0 : index
      %18 = vector.load %arg7[%c0_19, %c0_20] : memref<2x10xf32, #tpu.memory_space<vmem>>, vector<2x10xf32>
      %19 = vector.broadcast %17 : vector<1x10xf32> to vector<2x10xf32>
      %20 = arith.addf %18, %19 : vector<2x10xf32>
      %c0_21 = arith.constant 0 : index
      %c0_22 = arith.constant 0 : index
      %21 = vector.load %arg8[%c0_21, %c0_22] : memref<2x10xf32, #tpu.memory_space<vmem>>, vector<2x10xf32>
      %22 = vector.broadcast %17 : vector<1x10xf32> to vector<2x10xf32>
      %23 = arith.addf %21, %22 : vector<2x10xf32>
      %24 = tpu.iota {dimensions = array<i32: 1>} : vector<2x10xi32>
      %cst_23 = arith.constant dense<0xFF800000> : vector<2xf32>
      %25 = vector.multi_reduction <maximumf>, %20, %cst_23 [1] : vector<2x10xf32> to vector<2xf32>
      %26 = vector.shape_cast %25 : vector<2xf32> to vector<2x1xf32>
      %27 = vector.broadcast %26 : vector<2x1xf32> to vector<2x10xf32>
      %28 = arith.cmpf oeq, %20, %27 : vector<2x10xf32>
      %c10_i32 = arith.constant 10 : i32
      %29 = vector.broadcast %c10_i32 : i32 to vector<2x10xi32>
      %30 = arith.select %28, %24, %29 : vector<2x10xi1>, vector<2x10xi32>
      %cst_24 = arith.constant dense<2147483647> : vector<2xi32>
      %31 = vector.multi_reduction <minsi>, %30, %cst_24 [1] : vector<2x10xi32> to vector<2xi32>
      %32 = vector.shape_cast %31 : vector<2xi32> to vector<2x1xi32>
      %cst_25 = arith.constant 0.000000e+00 : f32
      %33 = vector.broadcast %cst_25 : f32 to vector<2x10xf32>
      %34 = arith.subf %33, %23 : vector<2x10xf32>
      %cst_26 = arith.constant dense<0xFF800000> : vector<2xf32>
      %35 = vector.multi_reduction <maximumf>, %34, %cst_26 [1] : vector<2x10xf32> to vector<2xf32>
      %36 = vector.shape_cast %35 : vector<2xf32> to vector<2x1xf32>
      %37 = vector.broadcast %36 : vector<2x1xf32> to vector<2x10xf32>
      %38 = arith.subf %34, %37 : vector<2x10xf32>
      %39 = math.exp %38 : vector<2x10xf32>
      %cst_27 = arith.constant dense<0.000000e+00> : vector<2xf32>
      %40 = vector.multi_reduction <add>, %39, %cst_27 [1] : vector<2x10xf32> to vector<2xf32>
      %41 = vector.shape_cast %40 : vector<2xf32> to vector<2x1xf32>
      %42 = math.log %41 : vector<2x1xf32>
      %43 = arith.addf %36, %42 : vector<2x1xf32>
      %44 = vector.broadcast %32 : vector<2x1xi32> to vector<2x10xi32>
      %45 = arith.cmpi eq, %24, %44 : vector<2x10xi32>
      %cst_28 = arith.constant 0.000000e+00 : f32
      %46 = vector.broadcast %cst_28 : f32 to vector<2x10xf32>
      %47 = arith.select %45, %34, %46 : vector<2x10xi1>, vector<2x10xf32>
      %cst_29 = arith.constant dense<0.000000e+00> : vector<2xf32>
      %48 = vector.multi_reduction <add>, %47, %cst_29 [1] : vector<2x10xf32> to vector<2xf32>
      %49 = vector.shape_cast %48 : vector<2xf32> to vector<2x1xf32>
      %50 = arith.subf %43, %49 : vector<2x1xf32>
      %51 = vector.shape_cast %50 : vector<2x1xf32> to vector<2x1xf32>
      %52 = vector.broadcast %51 : vector<2x1xf32> to vector<2x128xf32>
      %c0_30 = arith.constant 0 : index
      %c0_31 = arith.constant 0 : index
      %53 = vector.load %arg6[%c0_30, %c0_31] : memref<2x128xf32, #tpu.memory_space<vmem>>, vector<2x128xf32>
      tpu.vector_store %arg6[%c0_30, %c0_31], %52 {strides = array<i32>} : memref<2x128xf32, #tpu.memory_space<vmem>>, vector<2x128xf32>,
    } else {
    }
    return
  }
  func.func @transform_0(%arg0: i32, %arg1: i32) -> (i32, i32) {
    %c0_i32 = arith.constant 0 : i32
    return %arg0, %arg1 : i32, i32
  }
  func.func @transform_1(%arg0: i32, %arg1: i32) -> (i32, i32) {
    %c0_i32 = arith.constant 0 : i32
    return %arg0, %arg1 : i32, i32
  }
  func.func @transform_2(%arg0: i32, %arg1: i32) -> (i32, i32) {
    %c0_i32 = arith.constant 0 : i32
    %c0_i32_0 = arith.constant 0 : i32
    %c0_i32_1 = arith.constant 0 : i32
    return %c0_i32, %c0_i32_0 : i32, i32
  }
  func.func @transform_3(%arg0: i32, %arg1: i32) -> (i32, i32) {
    %c0_i32 = arith.constant 0 : i32
    %c0_i32_0 = arith.constant 0 : i32
    %c0_i32_1 = arith.constant 0 : i32
    return %c0_i32, %c0_i32_0 : i32, i32
  }
  func.func @transform_4(%arg0: i32, %arg1: i32) -> (i32, i32) {
    %c0_i32 = arith.constant 0 : i32
    %c0_i32_0 = arith.constant 0 : i32
    return %arg0, %c0_i32 : i32, i32
  }
}

</mosaic_0001>

<llo_original>
// kernel: tpu_custom_call.1
$region0: #{tpu_custom_call.1}
  #allocation0 [shape = 'u32[]', space=smem, size = 0x4, offset = 0x4, fixed_abs, tag = 'smem constant byte address 0x4 - core index']
  #allocation1 [shape = 'u32[144,128]{1,0:T(1,128)}', space=vmem, size = 0x12000, scoped, tag = 'internal scratch']
  #allocation2 [shape = 'f32[2,10]{1,0:T(2,128)}', space=vmem, size = 0x400, scoped, tag = 'scratch operand']
  #allocation3 [shape = 'f32[2,10]{1,0:T(2,128)}', space=vmem, size = 0x400, scoped, tag = 'scratch operand']
  %s0 = inlined_call_operand.hbm [shape: bf16[2,1024], index: 0, kind: input, shape index: {}]
  %s1 = inlined_call_operand.hbm [shape: bf16[2,1024], index: 1, kind: input, shape index: {}]
  %s2 = inlined_call_operand.hbm [shape: bf16[10,1024], index: 2, kind: input, shape index: {}]
  %s3 = inlined_call_operand.vmem [shape: f32[1,10], index: 3, kind: input, shape index: {}]
  %s4 = inlined_call_operand.hbm [shape: f32[2,128], index: 4, kind: output, shape index: {}]
  %s5 = sld [smem:[#allocation0]]
  $region46: #{tpu_custom_call.1} parent=0
    _
  %s7 = ssub.s32 1, %s5
  %s8 = scalar_select 0, %s7, %s5
  $region1: #{tpu_custom_call.1} parent=0
    #allocation4 [shape = 'u8[4096]{0}', space=vmem, size = 0x1000, scoped, tag = 'input window, operand 0, single buffered']
    #allocation5 [shape = 's32[1]{0}', space=sflag, size = 0x4, scoped, tag = 'scoped memory for tpu_custom_call.1']
    #allocation6 [shape = 's32[1]{0}', space=sflag, size = 0x4, scoped, tag = 'scoped memory for tpu_custom_call.1']
    #allocation7 [shape = 'u8[4096]{0}', space=vmem, size = 0x1000, scoped, tag = 'input window, operand 1, single buffered']
    #allocation8 [shape = 's32[1]{0}', space=sflag, size = 0x4, scoped, tag = 'scoped memory for tpu_custom_call.1']
    #allocation9 [shape = 'u8[32768]{0}', space=vmem, size = 0x8000, scoped, tag = 'input window, operand 2, single buffered']
    #allocation10 [shape = 'u8[1024]{0}', space=vmem, size = 0x400, scoped, tag = 'output window, operand 0, single buffered']
    %9 = vsyncpa [#allocation5], 0
    %10 = vsyncpa [#allocation8], 0
    %11 = vsyncpa [#allocation6], 0
    // Predicated region
    $region2: #{tpu_custom_call.1} parent=1 // pred_check
      _
    $region3: #{tpu_custom_call.1} parent=1 // pred_check_branch
      %13 = sbr.rel (0) target = $region5
    $region4: #{tpu_custom_call.1} parent=1 // pred_region
      %s15 = ssub.s32 128, 128
      %16 = vsyncadd [#allocation5], %s15
      %s18 = sshll.u32 [#allocation4], 4
      %s19 = int_to_ptr.vmem [resolvable:$true] %s18
      %21 = dma.hbm_to_vmem [thread:$0]  %s0, 128, %s19, [#allocation5]
    $region5: #{tpu_custom_call.1} parent=1 // pred_fallthru
      _
    // Predicated region
    $region6: #{tpu_custom_call.1} parent=1 // pred_check
      _
    $region7: #{tpu_custom_call.1} parent=1 // pred_check_branch
      %23 = sbr.rel (0) target = $region9
    $region8: #{tpu_custom_call.1} parent=1 // pred_region
      %s25 = ssub.s32 128, 128
      %26 = vsyncadd [#allocation8], %s25
      %s28 = sshll.u32 [#allocation7], 4
      %s29 = int_to_ptr.vmem [resolvable:$true] %s28
      %31 = dma.hbm_to_vmem [thread:$0]  %s1, 128, %s29, [#allocation8]
    $region9: #{tpu_custom_call.1} parent=1 // pred_fallthru
      _
    // Predicated region
    $region10: #{tpu_custom_call.1} parent=1 // pred_check
      _
    $region11: #{tpu_custom_call.1} parent=1 // pred_check_branch
      %33 = sbr.rel (0) target = $region13
    $region12: #{tpu_custom_call.1} parent=1 // pred_region
      %s35 = ssub.s32 1024, 1024
      %36 = vsyncadd [#allocation8], %s35
      %s37 = sshll.u32 [#allocation9], 4
      %s38 = int_to_ptr.vmem [resolvable:$true] %s37
      %43 = dma.hbm_to_vmem [thread:$0]  %s2, 1024, %s38, [#allocation8], 512, 512, 32
    $region13: #{tpu_custom_call.1} parent=1 // pred_fallthru
      _
    // Predicated region
    $region14: #{tpu_custom_call.1} parent=1 // pred_check
      _
    $region15: #{tpu_custom_call.1} parent=1 // pred_check_branch
      %45 = sbr.rel (0) target = $region17
    $region16: #{tpu_custom_call.1} parent=1 // pred_region
      _
    $region17: #{tpu_custom_call.1} parent=1 // pred_fallthru
      _
    // Predicated region
    $region18: #{tpu_custom_call.1} parent=1 // pred_check
      _
    $region19: #{tpu_custom_call.1} parent=1 // pred_check_branch
      %47 = sbr.rel (0) target = $region21
    $region20: #{tpu_custom_call.1} parent=1 // pred_region
      %48 = dma.done [#allocation5], 128
    $region21: #{tpu_custom_call.1} parent=1 // pred_fallthru
      _
    // Predicated region
    $region22: #{tpu_custom_call.1} parent=1 // pred_check
      _
    $region23: #{tpu_custom_call.1} parent=1 // pred_check_branch
      %50 = sbr.rel (0) target = $region25
    $region24: #{tpu_custom_call.1} parent=1 // pred_region
      %51 = dma.done [#allocation8], 128
    $region25: #{tpu_custom_call.1} parent=1 // pred_fallthru
      _
    // Predicated region
    $region26: #{tpu_custom_call.1} parent=1 // pred_check
      _
    $region27: #{tpu_custom_call.1} parent=1 // pred_check_branch
      %53 = sbr.rel (0) target = $region29
    $region28: #{tpu_custom_call.1} parent=1 // pred_region
      %54 = dma.done [#allocation8], 1024
    $region29: #{tpu_custom_call.1} parent=1 // pred_fallthru
      _
    %p56 = scmp.eq.s32.totalorder 0, 0
    // Predicated region
    $region30: #{tpu_custom_call.1} parent=1 // pred_check
      %p57 = pneg %p56
    $region31: #{tpu_custom_call.1} parent=1 // pred_check_branch
      %59 = sbr.rel (%p57) target = $region33
    $region32: #{tpu_custom_call.1} parent=1 // pred_region
      %vm60 = vcmask 74752
      %61 = vst.msk [vmem:[#allocation2] sm:$0x3] %vm60, 0.0
      %62 = vst.msk [vmem:[#allocation3] sm:$0x3] %vm60, 0.0
    $region33: #{tpu_custom_call.1} parent=1 // pred_fallthru
      _
    %v63 = vld [vmem:[#allocation9] sm:$0xff]
    %v64 = vld [vmem:[#allocation9 + $0x8] sm:$0xff]
    %v65 = vld [vmem:[#allocation9 + $0x10] sm:$0xff]
    %v66 = vld [vmem:[#allocation9 + $0x18] sm:$0xff]
    %v67 = vld [vmem:[#allocation9 + $0x20] sm:$0x11]
    %v68 = vld [vmem:[#allocation9 + $0x28] sm:$0x11]
    %v69 = vld [vmem:[#allocation9 + $0x30] sm:$0x11]
    %v70 = vld [vmem:[#allocation9 + $0x38] sm:$0x11]
    %v71 = vld [vmem:[#allocation2] sm:$0x3]
    %v72 = vld [vmem:[#allocation4] sm:$0xff]
    %v74 = vcombine.high %v72, %v72
    %v76 = vunpack.c.l.s4 1966171168
    %v77 = vunpack.c.0.s8 %v76
    %v78 = vlaneseq
    %v79 = vshrl.u32 %v78, 7
    %v80 = vsub.s32 %v77, %v79
    %v81 = vrot.slane %v72, %v80
    %v83 = vunpack.c.l.s4 1966171168
    %v84 = vunpack.c.0.s8 %v83
    %v85 = vlaneseq
    %v86 = vshrl.u32 %v85, 7
    %v87 = vsub.s32 %v84, %v86
    %v88 = vrot.slane %v74, %v87
    %v89 = vcombine.high %v81, %v81
    %v90 = vcombine.high %v88, %v88
    %v92 = vunpack.c.l.s4 1966171168
    %v93 = vunpack.c.0.s8 %v92
    %v94 = vlaneseq
    %v95 = vshrl.u32 %v94, 7
    %v96 = vsub.s32 %v93, %v95
    %v97 = vrot.slane %v81, %v96
    %v99 = vunpack.c.l.s4 1966171168
    %v100 = vunpack.c.0.s8 %v99
    %v101 = vlaneseq
    %v102 = vshrl.u32 %v101, 7
    %v103 = vsub.s32 %v100, %v102
    %v104 = vrot.slane %v88, %v103
    %v106 = vunpack.c.l.s4 1966171168
    %v107 = vunpack.c.0.s8 %v106
    %v108 = vlaneseq
    %v109 = vshrl.u32 %v108, 7
    %v110 = vsub.s32 %v107, %v109
    %v111 = vrot.slane %v89, %v110
    %v113 = vunpack.c.l.s4 1966171168
    %v114 = vunpack.c.0.s8 %v113
    %v115 = vlaneseq
    %v116 = vshrl.u32 %v115, 7
    %v117 = vsub.s32 %v114, %v116
    %v118 = vrot.slane %v90, %v117
    %v119 = vcombine.high %v97, %v97
    %v120 = vcombine.high %v104, %v104
    %v121 = vcombine.high %v111, %v111
    %v122 = vcombine.high %v118, %v118
    %v139 = vunpack.c.l.b16 %v63
    %v140 = vunpack.c.h.b16 %v63
    %v141 = vunpack.c.l.b16 %v64
    %v142 = vunpack.c.h.b16 %v64
    %v143 = vunpack.c.l.b16 %v65
    %v144 = vunpack.c.h.b16 %v65
    %v145 = vunpack.c.l.b16 %v66
    %v146 = vunpack.c.h.b16 %v66
    %v147 = vunpack.c.l.b16 %v67
    %v148 = vunpack.c.h.b16 %v67
    %v149 = vunpack.c.l.b16 %v68
    %v150 = vunpack.c.h.b16 %v68
    %v151 = vunpack.c.l.b16 %v69
    %v152 = vunpack.c.h.b16 %v69
    %v153 = vunpack.c.l.b16 %v70
    %v154 = vunpack.c.h.b16 %v70
    %v155 = vpack.c.b16 %v147, %v139
    %v156 = vpack.c.b16 %v148, %v140
    %v157 = vpack.c.b16 %v149, %v141
    %v158 = vpack.c.b16 %v150, %v142
    %v159 = vpack.c.b16 %v151, %v143
    %v160 = vpack.c.b16 %v152, %v144
    %v161 = vpack.c.b16 %v153, %v145
    %v162 = vpack.c.b16 %v154, %v146
    %171 = vmatprep.subr.bf16.mxu0 %v156
    %172 = vmatpush1.bf16.xpose.msra.mxu0 %v155
    %173 = vmatprep.subr.bf16.mxu0 0
    %174 = vmatpush1.bf16.xpose.msra.mxu0 0
    %175 = vmatprep.subr.bf16.mxu0 0
    %176 = vmatpush1.bf16.xpose.msra.mxu0 0
    %177 = vmatprep.subr.bf16.mxu0 0
    %178 = vmatpush1.bf16.xpose.msra.mxu0 0
    %179 = vmatprep.subr.bf16.mxu0 0
    %180 = vmatpush1.bf16.xpose.msra.mxu0 0
    %181 = vmatprep.subr.bf16.mxu0 0
    %182 = vmatpush1.bf16.xpose.msra.mxu0 0
    %183 = vmatprep.subr.bf16.mxu0 0
    %184 = vmatpush1.bf16.xpose.msra.mxu0 0
    %185 = vmatprep.subr.bf16.mxu0 0
    %186 = vmatpush1.bf16.xpose.msra.mxu0 0
    %187 = vmatprep.subr.bf16.mxu0 0
    %188 = vmatpush1.bf16.xpose.msra.mxu0 0
    %189 = vmatprep.subr.bf16.mxu0 0
    %190 = vmatpush1.bf16.xpose.msra.mxu0 0
    %191 = vmatprep.subr.bf16.mxu0 0
    %192 = vmatpush1.bf16.xpose.msra.mxu0 0
    %193 = vmatprep.subr.bf16.mxu0 0
    %194 = vmatpush1.bf16.xpose.msra.mxu0 0
    %195 = vmatprep.subr.bf16.mxu0 0
    %196 = vmatpush1.bf16.xpose.msra.mxu0 0
    %197 = vmatprep.subr.bf16.mxu0 0
    %198 = vmatpush1.bf16.xpose.msra.mxu0 0
    %199 = vmatprep.subr.bf16.mxu0 0
    %200 = vmatpush1.bf16.xpose.msra.mxu0 0
    %201 = vmatprep.subr.bf16.mxu0 0
    %202 = vmatpush1.bf16.xpose.msra.mxu0 0
    %203 = vmatprep.mubr.bf16.mxu0 %v111
    %204 = vmatmul.mubr.bf16.gmra.mrb[0].mxu0 %v97
    %v205 = vpop.f32.mrb[0].mxu0
    %v206 = vadd.f32 0.0, %v205
    %v207 = vpop.f32.mrb[0].mxu0
    %v208 = vpop.f32.mrb[0].mxu0
    %v209 = vpop.f32.mrb[0].mxu0
    %210 = vdwg.mxu0
    %211 = vmatprep.subr.bf16.mxu0 %v158
    %212 = vmatpush1.bf16.xpose.msra.mxu0 %v157
    %213 = vmatprep.subr.bf16.mxu0 0
    %214 = vmatpush1.bf16.xpose.msra.mxu0 0
    %215 = vmatprep.subr.bf16.mxu0 0
    %216 = vmatpush1.bf16.xpose.msra.mxu0 0
    %217 = vmatprep.subr.bf16.mxu0 0
    %218 = vmatpush1.bf16.xpose.msra.mxu0 0
    %219 = vmatprep.subr.bf16.mxu0 0
    %220 = vmatpush1.bf16.xpose.msra.mxu0 0
    %221 = vmatprep.subr.bf16.mxu0 0
    %222 = vmatpush1.bf16.xpose.msra.mxu0 0
    %223 = vmatprep.subr.bf16.mxu0 0
    %224 = vmatpush1.bf16.xpose.msra.mxu0 0
    %225 = vmatprep.subr.bf16.mxu0 0
    %226 = vmatpush1.bf16.xpose.msra.mxu0 0
    %227 = vmatprep.subr.bf16.mxu0 0
    %228 = vmatpush1.bf16.xpose.msra.mxu0 0
    %229 = vmatprep.subr.bf16.mxu0 0
    %230 = vmatpush1.bf16.xpose.msra.mxu0 0
    %231 = vmatprep.subr.bf16.mxu0 0
    %232 = vmatpush1.bf16.xpose.msra.mxu0 0
    %233 = vmatprep.subr.bf16.mxu0 0
    %234 = vmatpush1.bf16.xpose.msra.mxu0 0
    %235 = vmatprep.subr.bf16.mxu0 0
    %236 = vmatpush1.bf16.xpose.msra.mxu0 0
    %237 = vmatprep.subr.bf16.mxu0 0
    %238 = vmatpush1.bf16.xpose.msra.mxu0 0
    %239 = vmatprep.subr.bf16.mxu0 0
    %240 = vmatpush1.bf16.xpose.msra.mxu0 0
    %241 = vmatprep.subr.bf16.mxu0 0
    %242 = vmatpush1.bf16.xpose.msra.mxu0 0
    %243 = vmatprep.mubr.bf16.mxu0 %v121
    %244 = vmatmul.mubr.bf16.gmra.mrb[0].mxu0 %v119
    %v245 = vpop.f32.mrb[0].mxu0
    %v246 = vadd.f32 %v206, %v245
    %v247 = vpop.f32.mrb[0].mxu0
    %v248 = vpop.f32.mrb[0].mxu0
    %v249 = vpop.f32.mrb[0].mxu0
    %250 = vdwg.mxu0
    %251 = vmatprep.subr.bf16.mxu0 %v160
    %252 = vmatpush1.bf16.xpose.msra.mxu0 %v159
    %253 = vmatprep.subr.bf16.mxu0 0
    %254 = vmatpush1.bf16.xpose.msra.mxu0 0
    %255 = vmatprep.subr.bf16.mxu0 0
    %256 = vmatpush1.bf16.xpose.msra.mxu0 0
    %257 = vmatprep.subr.bf16.mxu0 0
    %258 = vmatpush1.bf16.xpose.msra.mxu0 0
    %259 = vmatprep.subr.bf16.mxu0 0
    %260 = vmatpush1.bf16.xpose.msra.mxu0 0
    %261 = vmatprep.subr.bf16.mxu0 0
    %262 = vmatpush1.bf16.xpose.msra.mxu0 0
    %263 = vmatprep.subr.bf16.mxu0 0
    %264 = vmatpush1.bf16.xpose.msra.mxu0 0
    %265 = vmatprep.subr.bf16.mxu0 0
    %266 = vmatpush1.bf16.xpose.msra.mxu0 0
    %267 = vmatprep.subr.bf16.mxu0 0
    %268 = vmatpush1.bf16.xpose.msra.mxu0 0
    %269 = vmatprep.subr.bf16.mxu0 0
    %270 = vmatpush1.bf16.xpose.msra.mxu0 0
    %271 = vmatprep.subr.bf16.mxu0 0
    %272 = vmatpush1.bf16.xpose.msra.mxu0 0
    %273 = vmatprep.subr.bf16.mxu0 0
    %274 = vmatpush1.bf16.xpose.msra.mxu0 0
    %275 = vmatprep.subr.bf16.mxu0 0
    %276 = vmatpush1.bf16.xpose.msra.mxu0 0
    %277 = vmatprep.subr.bf16.mxu0 0
    %278 = vmatpush1.bf16.xpose.msra.mxu0 0
    %279 = vmatprep.subr.bf16.mxu0 0
    %280 = vmatpush1.bf16.xpose.msra.mxu0 0
    %281 = vmatprep.subr.bf16.mxu0 0
    %282 = vmatpush1.bf16.xpose.msra.mxu0 0
    %283 = vmatprep.mubr.bf16.mxu0 %v118
    %284 = vmatmul.mubr.bf16.gmra.mrb[0].mxu0 %v104
    %v285 = vpop.f32.mrb[0].mxu0
    %v286 = vadd.f32 %v246, %v285
    %v287 = vpop.f32.mrb[0].mxu0
    %v288 = vpop.f32.mrb[0].mxu0
    %v289 = vpop.f32.mrb[0].mxu0
    %290 = vdwg.mxu0
    %291 = vmatprep.subr.bf16.mxu0 %v162
    %292 = vmatpush1.bf16.xpose.msra.mxu0 %v161
    %293 = vmatprep.subr.bf16.mxu0 0
    %294 = vmatpush1.bf16.xpose.msra.mxu0 0
    %295 = vmatprep.subr.bf16.mxu0 0
    %296 = vmatpush1.bf16.xpose.msra.mxu0 0
    %297 = vmatprep.subr.bf16.mxu0 0
    %298 = vmatpush1.bf16.xpose.msra.mxu0 0
    %299 = vmatprep.subr.bf16.mxu0 0
    %300 = vmatpush1.bf16.xpose.msra.mxu0 0
    %301 = vmatprep.subr.bf16.mxu0 0
    %302 = vmatpush1.bf16.xpose.msra.mxu0 0
    %303 = vmatprep.subr.bf16.mxu0 0
    %304 = vmatpush1.bf16.xpose.msra.mxu0 0
    %305 = vmatprep.subr.bf16.mxu0 0
    %306 = vmatpush1.bf16.xpose.msra.mxu0 0
    %307 = vmatprep.subr.bf16.mxu0 0
    %308 = vmatpush1.bf16.xpose.msra.mxu0 0
    %309 = vmatprep.subr.bf16.mxu0 0
    %310 = vmatpush1.bf16.xpose.msra.mxu0 0
    %311 = vmatprep.subr.bf16.mxu0 0
    %312 = vmatpush1.bf16.xpose.msra.mxu0 0
    %313 = vmatprep.subr.bf16.mxu0 0
    %314 = vmatpush1.bf16.xpose.msra.mxu0 0
    %315 = vmatprep.subr.bf16.mxu0 0
    %316 = vmatpush1.bf16.xpose.msra.mxu0 0
    %317 = vmatprep.subr.bf16.mxu0 0
    %318 = vmatpush1.bf16.xpose.msra.mxu0 0
    %319 = vmatprep.subr.bf16.mxu0 0
    %320 = vmatpush1.bf16.xpose.msra.mxu0 0
    %321 = vmatprep.subr.bf16.mxu0 0
    %322 = vmatpush1.bf16.xpose.msra.mxu0 0
    %323 = vmatprep.mubr.bf16.mxu0 %v122
    %324 = vmatmul.mubr.bf16.gmra.mrb[0].mxu0 %v120
    %v325 = vpop.f32.mrb[0].mxu0
    %v326 = vadd.f32 %v286, %v325
    %v327 = vpop.f32.mrb[0].mxu0
    %v328 = vpop.f32.mrb[0].mxu0
    %v329 = vpop.f32.mrb[0].mxu0
    %330 = vdwg.mxu0
    %v331 = vadd.f32 %v71, %v326
    %vm332 = vcmask 74752
    %333 = vst.msk [vmem:[#allocation2] sm:$0x3] %vm332, %v331
    %v334 = vld [vmem:[#allocation3] sm:$0x3]
    %v335 = vld [vmem:[#allocation7] sm:$0xff]
    %v337 = vcombine.high %v335, %v335
    %v339 = vunpack.c.l.s4 1966171168
    %v340 = vunpack.c.0.s8 %v339
    %v341 = vlaneseq
    %v342 = vshrl.u32 %v341, 7
    %v343 = vsub.s32 %v340, %v342
    %v344 = vrot.slane %v335, %v343
    %v346 = vunpack.c.l.s4 1966171168
    %v347 = vunpack.c.0.s8 %v346
    %v348 = vlaneseq
    %v349 = vshrl.u32 %v348, 7
    %v350 = vsub.s32 %v347, %v349
    %v351 = vrot.slane %v337, %v350
    %v352 = vcombine.high %v344, %v344
    %v353 = vcombine.high %v351, %v351
    %v355 = vunpack.c.l.s4 1966171168
    %v356 = vunpack.c.0.s8 %v355
    %v357 = vlaneseq
    %v358 = vshrl.u32 %v357, 7
    %v359 = vsub.s32 %v356, %v358
    %v360 = vrot.slane %v344, %v359
    %v362 = vunpack.c.l.s4 1966171168
    %v363 = vunpack.c.0.s8 %v362
    %v364 = vlaneseq
    %v365 = vshrl.u32 %v364, 7
    %v366 = vsub.s32 %v363, %v365
    %v367 = vrot.slane %v351, %v366
    %v369 = vunpack.c.l.s4 1966171168
    %v370 = vunpack.c.0.s8 %v369
    %v371 = vlaneseq
    %v372 = vshrl.u32 %v371, 7
    %v373 = vsub.s32 %v370, %v372
    %v374 = vrot.slane %v352, %v373
    %v376 = vunpack.c.l.s4 1966171168
    %v377 = vunpack.c.0.s8 %v376
    %v378 = vlaneseq
    %v379 = vshrl.u32 %v378, 7
    %v380 = vsub.s32 %v377, %v379
    %v381 = vrot.slane %v353, %v380
    %v382 = vcombine.high %v360, %v360
    %v383 = vcombine.high %v367, %v367
    %v384 = vcombine.high %v374, %v374
    %v385 = vcombine.high %v381, %v381
    %394 = vmatprep.subr.bf16.mxu0 %v156
    %395 = vmatpush1.bf16.xpose.msra.mxu0 %v155
    %396 = vmatprep.subr.bf16.mxu0 0
    %397 = vmatpush1.bf16.xpose.msra.mxu0 0
    %398 = vmatprep.subr.bf16.mxu0 0
    %399 = vmatpush1.bf16.xpose.msra.mxu0 0
    %400 = vmatprep.subr.bf16.mxu0 0
    %401 = vmatpush1.bf16.xpose.msra.mxu0 0
    %402 = vmatprep.subr.bf16.mxu0 0
    %403 = vmatpush1.bf16.xpose.msra.mxu0 0
    %404 = vmatprep.subr.bf16.mxu0 0
    %405 = vmatpush1.bf16.xpose.msra.mxu0 0
    %406 = vmatprep.subr.bf16.mxu0 0
    %407 = vmatpush1.bf16.xpose.msra.mxu0 0
    %408 = vmatprep.subr.bf16.mxu0 0
    %409 = vmatpush1.bf16.xpose.msra.mxu0 0
    %410 = vmatprep.subr.bf16.mxu0 0
    %411 = vmatpush1.bf16.xpose.msra.mxu0 0
    %412 = vmatprep.subr.bf16.mxu0 0
    %413 = vmatpush1.bf16.xpose.msra.mxu0 0
    %414 = vmatprep.subr.bf16.mxu0 0
    %415 = vmatpush1.bf16.xpose.msra.mxu0 0
    %416 = vmatprep.subr.bf16.mxu0 0
    %417 = vmatpush1.bf16.xpose.msra.mxu0 0
    %418 = vmatprep.subr.bf16.mxu0 0
    %419 = vmatpush1.bf16.xpose.msra.mxu0 0
    %420 = vmatprep.subr.bf16.mxu0 0
    %421 = vmatpush1.bf16.xpose.msra.mxu0 0
    %422 = vmatprep.subr.bf16.mxu0 0
    %423 = vmatpush1.bf16.xpose.msra.mxu0 0
    %424 = vmatprep.subr.bf16.mxu0 0
    %425 = vmatpush1.bf16.xpose.msra.mxu0 0
    %426 = vmatprep.mubr.bf16.mxu0 %v374
    %427 = vmatmul.mubr.bf16.gmra.mrb[0].mxu0 %v360
    %v428 = vpop.f32.mrb[0].mxu0
    %v429 = vadd.f32 0.0, %v428
    %v430 = vpop.f32.mrb[0].mxu0
    %v431 = vpop.f32.mrb[0].mxu0
    %v432 = vpop.f32.mrb[0].mxu0
    %433 = vdwg.mxu0
    %434 = vmatprep.subr.bf16.mxu0 %v158
    %435 = vmatpush1.bf16.xpose.msra.mxu0 %v157
    %436 = vmatprep.subr.bf16.mxu0 0
    %437 = vmatpush1.bf16.xpose.msra.mxu0 0
    %438 = vmatprep.subr.bf16.mxu0 0
    %439 = vmatpush1.bf16.xpose.msra.mxu0 0
    %440 = vmatprep.subr.bf16.mxu0 0
    %441 = vmatpush1.bf16.xpose.msra.mxu0 0
    %442 = vmatprep.subr.bf16.mxu0 0
    %443 = vmatpush1.bf16.xpose.msra.mxu0 0
    %444 = vmatprep.subr.bf16.mxu0 0
    %445 = vmatpush1.bf16.xpose.msra.mxu0 0
    %446 = vmatprep.subr.bf16.mxu0 0
    %447 = vmatpush1.bf16.xpose.msra.mxu0 0
    %448 = vmatprep.subr.bf16.mxu0 0
    %449 = vmatpush1.bf16.xpose.msra.mxu0 0
    %450 = vmatprep.subr.bf16.mxu0 0
    %451 = vmatpush1.bf16.xpose.msra.mxu0 0
    %452 = vmatprep.subr.bf16.mxu0 0
    %453 = vmatpush1.bf16.xpose.msra.mxu0 0
    %454 = vmatprep.subr.bf16.mxu0 0
    %455 = vmatpush1.bf16.xpose.msra.mxu0 0
    %456 = vmatprep.subr.bf16.mxu0 0
    %457 = vmatpush1.bf16.xpose.msra.mxu0 0
    %458 = vmatprep.subr.bf16.mxu0 0
    %459 = vmatpush1.bf16.xpose.msra.mxu0 0
    %460 = vmatprep.subr.bf16.mxu0 0
    %461 = vmatpush1.bf16.xpose.msra.mxu0 0
    %462 = vmatprep.subr.bf16.mxu0 0
    %463 = vmatpush1.bf16.xpose.msra.mxu0 0
    %464 = vmatprep.subr.bf16.mxu0 0
    %465 = vmatpush1.bf16.xpose.msra.mxu0 0
    %466 = vmatprep.mubr.bf16.mxu0 %v384
    %467 = vmatmul.mubr.bf16.gmra.mrb[0].mxu0 %v382
    %v468 = vpop.f32.mrb[0].mxu0
    %v469 = vadd.f32 %v429, %v468
    %v470 = vpop.f32.mrb[0].mxu0
    %v471 = vpop.f32.mrb[0].mxu0
    %v472 = vpop.f32.mrb[0].mxu0
    %473 = vdwg.mxu0
    %474 = vmatprep.subr.bf16.mxu0 %v160
    %475 = vmatpush1.bf16.xpose.msra.mxu0 %v159
    %476 = vmatprep.subr.bf16.mxu0 0
    %477 = vmatpush1.bf16.xpose.msra.mxu0 0
    %478 = vmatprep.subr.bf16.mxu0 0
    %479 = vmatpush1.bf16.xpose.msra.mxu0 0
    %480 = vmatprep.subr.bf16.mxu0 0
    %481 = vmatpush1.bf16.xpose.msra.mxu0 0
    %482 = vmatprep.subr.bf16.mxu0 0
    %483 = vmatpush1.bf16.xpose.msra.mxu0 0
    %484 = vmatprep.subr.bf16.mxu0 0
    %485 = vmatpush1.bf16.xpose.msra.mxu0 0
    %486 = vmatprep.subr.bf16.mxu0 0
    %487 = vmatpush1.bf16.xpose.msra.mxu0 0
    %488 = vmatprep.subr.bf16.mxu0 0
    %489 = vmatpush1.bf16.xpose.msra.mxu0 0
    %490 = vmatprep.subr.bf16.mxu0 0
    %491 = vmatpush1.bf16.xpose.msra.mxu0 0
    %492 = vmatprep.subr.bf16.mxu0 0
    %493 = vmatpush1.bf16.xpose.msra.mxu0 0
    %494 = vmatprep.subr.bf16.mxu0 0
    %495 = vmatpush1.bf16.xpose.msra.mxu0 0
    %496 = vmatprep.subr.bf16.mxu0 0
    %497 = vmatpush1.bf16.xpose.msra.mxu0 0
    %498 = vmatprep.subr.bf16.mxu0 0
    %499 = vmatpush1.bf16.xpose.msra.mxu0 0
    %500 = vmatprep.subr.bf16.mxu0 0
    %501 = vmatpush1.bf16.xpose.msra.mxu0 0
    %502 = vmatprep.subr.bf16.mxu0 0
    %503 = vmatpush1.bf16.xpose.msra.mxu0 0
    %504 = vmatprep.subr.bf16.mxu0 0
    %505 = vmatpush1.bf16.xpose.msra.mxu0 0
    %506 = vmatprep.mubr.bf16.mxu0 %v381
    %507 = vmatmul.mubr.bf16.gmra.mrb[0].mxu0 %v367
    %v508 = vpop.f32.mrb[0].mxu0
    %v509 = vadd.f32 %v469, %v508
    %v510 = vpop.f32.mrb[0].mxu0
    %v511 = vpop.f32.mrb[0].mxu0
    %v512 = vpop.f32.mrb[0].mxu0
    %513 = vdwg.mxu0
    %514 = vmatprep.subr.bf16.mxu0 %v162
    %515 = vmatpush1.bf16.xpose.msra.mxu0 %v161
    %516 = vmatprep.subr.bf16.mxu0 0
    %517 = vmatpush1.bf16.xpose.msra.mxu0 0
    %518 = vmatprep.subr.bf16.mxu0 0
    %519 = vmatpush1.bf16.xpose.msra.mxu0 0
    %520 = vmatprep.subr.bf16.mxu0 0
    %521 = vmatpush1.bf16.xpose.msra.mxu0 0
    %522 = vmatprep.subr.bf16.mxu0 0
    %523 = vmatpush1.bf16.xpose.msra.mxu0 0
    %524 = vmatprep.subr.bf16.mxu0 0
    %525 = vmatpush1.bf16.xpose.msra.mxu0 0
    %526 = vmatprep.subr.bf16.mxu0 0
    %527 = vmatpush1.bf16.xpose.msra.mxu0 0
    %528 = vmatprep.subr.bf16.mxu0 0
    %529 = vmatpush1.bf16.xpose.msra.mxu0 0
    %530 = vmatprep.subr.bf16.mxu0 0
    %531 = vmatpush1.bf16.xpose.msra.mxu0 0
    %532 = vmatprep.subr.bf16.mxu0 0
    %533 = vmatpush1.bf16.xpose.msra.mxu0 0
    %534 = vmatprep.subr.bf16.mxu0 0
    %535 = vmatpush1.bf16.xpose.msra.mxu0 0
    %536 = vmatprep.subr.bf16.mxu0 0
    %537 = vmatpush1.bf16.xpose.msra.mxu0 0
    %538 = vmatprep.subr.bf16.mxu0 0
    %539 = vmatpush1.bf16.xpose.msra.mxu0 0
    %540 = vmatprep.subr.bf16.mxu0 0
    %541 = vmatpush1.bf16.xpose.msra.mxu0 0
    %542 = vmatprep.subr.bf16.mxu0 0
    %543 = vmatpush1.bf16.xpose.msra.mxu0 0
    %544 = vmatprep.subr.bf16.mxu0 0
    %545 = vmatpush1.bf16.xpose.msra.mxu0 0
    %546 = vmatprep.mubr.bf16.mxu0 %v385
    %547 = vmatmul.mubr.bf16.gmra.mrb[0].mxu0 %v383
    %v548 = vpop.f32.mrb[0].mxu0
    %v549 = vadd.f32 %v509, %v548
    %v550 = vpop.f32.mrb[0].mxu0
    %v551 = vpop.f32.mrb[0].mxu0
    %v552 = vpop.f32.mrb[0].mxu0
    %553 = vdwg.mxu0
    %v554 = vadd.f32 %v334, %v549
    %555 = vst.msk [vmem:[#allocation3] sm:$0x3] %vm332, %v554
    // Predicated region
    $region34: #{tpu_custom_call.1} parent=1 // pred_check
      %p556 = pneg %p56
    $region35: #{tpu_custom_call.1} parent=1 // pred_check_branch
      %558 = sbr.rel (%p556) target = $region37
    $region36: #{tpu_custom_call.1} parent=1 // pred_region
      %v559 = vld [vmem:[%s3] sm:$0x1]
      %v560 = vld [vmem:[#allocation2] sm:$0x3]
      %v562 = vlaneseq
      %v563 = vshrl.u32 %v562, 7
      %v564 = vsub.s32 0, %v563
      %v565 = vrot.slane %v559, %v564
      %v567 = vadd.f32 %v560, %v565
      %v568 = vld [vmem:[#allocation3] sm:$0x3]
      %v569 = vadd.f32 %v568, %v565
      %v570 = vlaneseq
      %v571 = vand.u32 %v570, 127
      %v572 = vsel %vm332, %v567, -inf
      %573 = vmax.xlane.f32.xlu0 %v572
      %v574 = vpop.xlane.xlu0 %573
      %vm575 = vcmp.eq.f32.partialorder %v567, %v574
      %v576 = vsel %vm575, %v571, 10
      %v577 = vsel %vm332, %v576, 2147483647
      %v578 = vand.u32 %v577, 65535
      %v579 = vshra.s32 %v577, 16
      %v580 = vcvt.s32.f32 %v578
      %v581 = vcvt.s32.f32 %v579
      %582 = vmin.xlane.f32.xlu0 %v581
      %v583 = vpop.xlane.xlu0 %582
      %vm584 = vcmp.eq.f32.partialorder %v581, %v583
      %v585 = vsel %vm584, %v580, inf
      %586 = vmin.xlane.f32.xlu0 %v585
      %v587 = vpop.xlane.xlu0 %586
      %v588 = vcvt.f32.s32 %v587
      %v589 = vcvt.f32.s32 %v583
      %v590 = vshll.u32 %v589, 16
      %v591 = vadd.s32 %v590, %v588
      %v592 = vsub.f32 0.0, %v569
      %v593 = vsel %vm332, %v592, -inf
      %594 = vmax.xlane.f32.xlu0 %v593
      %v595 = vpop.xlane.xlu0 %594
      %v596 = vsub.f32 %v592, %v595
      %v597 = vmul.f32 %v596, 1.442695
      %v598 = vpow.pop %v597
      %v599 = vsel %vm332, %v598, 0.0
      %600 = vadd.xlane.f32.xlu0 %v599
      %v601 = vpop.xlane.xlu0 %600
      %v602 = vlog2.pop %v601
      %v603 = vmul.f32 %v602, 0.6931472
      %v604 = vadd.f32 %v595, %v603
      %vm605 = vcmp.eq.s32.totalorder %v571, %v591
      %v606 = vsel %vm605, %v592, 0.0
      %v607 = vsel %vm332, %v606, 0.0
      %608 = vadd.xlane.f32.xlu0 %v607
      %v609 = vpop.xlane.xlu0 %608
      %v610 = vsub.f32 %v604, %v609
      %611 = vst [vmem:[#allocation10] sm:$0x3] %v610
    $region37: #{tpu_custom_call.1} parent=1 // pred_fallthru
      _
    // Predicated region
    $region38: #{tpu_custom_call.1} parent=1 // pred_check
      _
    $region39: #{tpu_custom_call.1} parent=1 // pred_check_branch
      %613 = sbr.rel (0) target = $region41
    $region40: #{tpu_custom_call.1} parent=1 // pred_region
      %s615 = ssub.s32 32, 32
      %616 = vsyncadd [#allocation6], %s615
      %s618 = sshll.u32 [#allocation10], 4
      %s619 = int_to_ptr.vmem [resolvable:$true] %s618
      %621 = dma.vmem_to_hbm [thread:$0]  %s619, 32, %s4, [#allocation6]
    $region41: #{tpu_custom_call.1} parent=1 // pred_fallthru
      _
    // Predicated region
    $region42: #{tpu_custom_call.1} parent=1 // pred_check
      _
    $region43: #{tpu_custom_call.1} parent=1 // pred_check_branch
      %623 = sbr.rel (0) target = $region45
    $region44: #{tpu_custom_call.1} parent=1 // pred_region
      %624 = dma.done [#allocation6], 32
    $region45: #{tpu_custom_call.1} parent=1 // pred_fallthru
      _
    %625 = vsyncpa [#allocation5], 1
    %626 = vsyncpa [#allocation8], 1
    %627 = vsyncpa [#allocation6], 1

</llo_original>
